<compile_context>
chip_gen: v5e
topology: v5e:2x2
jax: 0.10.0
libtpu: 0.0.40
codegen_flags: <defaults>
</compile_context>

<pallas_src>
import functools

import jax
import jax.numpy as jnp
from jax import lax
from jax.experimental import pallas as pl
from jax.experimental.pallas import tpu as pltpu


def _nmae_kernel(logits_ref, targets_ref, out_ref, *, n_total, block_rows,
                 inv_scale):
    i = pl.program_id(0)

    x = logits_ref[...].astype(jnp.float32)              # (TN, C)
    tn, c = x.shape

    # Numerically-stable softmax pieces; the full probs tile is never formed.
    m = jnp.max(x, axis=1, keepdims=True)                 # (TN, 1)
    e = jnp.exp(x - m)                                    # (TN, C)
    denom = jnp.sum(e, axis=1, keepdims=True)             # (TN, 1)

    # Target-class probability via one-hot mask (no dynamic gather on TPU).
    tgt = targets_ref[...]                                 # (TN, 1) int32
    col_ids = lax.broadcasted_iota(jnp.int32, (tn, c), 1)
    e_t = jnp.sum(jnp.where(col_ids == tgt, e, 0.0), axis=1, keepdims=True)
    p_t = e_t / denom                                      # (TN, 1)

    # sum_j |p_j - onehot_j| == 2*(1 - p_t);  NMAE = that / (2*(K-1)).
    per_sample = (2.0 * (1.0 - p_t)) * inv_scale           # (TN, 1)

    # Mask rows past the true batch size (partial last tile).  Keep jnp.where:
    # padded rows may hold garbage -> inf/NaN, and NaN*0 would be NaN.
    rows = i * block_rows + lax.broadcasted_iota(jnp.int32, (tn, 1), 0)
    per_sample = jnp.where(rows < n_total, per_sample, 0.0)

    # Per-block partial sum, broadcast into a lane-dense (1, 8, 128) tile.
    partial = jnp.sum(per_sample)
    out_ref[...] = jnp.broadcast_to(partial, out_ref.shape).astype(jnp.float32)


def nmae_loss(logits, targets, num_classes=None, reduction='mean',
              block_rows=None):
    """NMAE loss. logits: (N, C) float; targets: (N,) int in [0, C)."""
    n, c = logits.shape
    if num_classes is None:
        num_classes = c
    # NOTE: num_classes only affects the 1/(2*(K-1)) scale (as in the PyTorch
    # module); the softmax / one-hot width is the logits width C.
    scale = 2.0 * (float(num_classes) - 1.0)
    if abs(scale) < 1e-9:
        scale = 1.0

    if reduction not in ('mean', 'sum'):
        # TODO(synk): reduction='none' (per-sample vector output) not implemented.
        raise NotImplementedError("reduction must be 'mean' or 'sum'")

    itemsize = jnp.dtype(logits.dtype).itemsize

    # Dtype-aware sublane alignment (packed sub-32-bit rows travel in 2s/4s).
    if itemsize <= 1:
        align = 32
    elif itemsize == 2:
        align = 16
    else:
        align = 8

    # Live-VMEM bytes per row per grid step:
    #   2x double-buffered input block + ~4 full-tile f32/int32 intermediates
    #   (x, e, iota, select) + slack for targets / row scalars.
    per_row = 2 * c * itemsize + 4 * c * 4 + 64
    vmem_budget = 36 * 1024 * 1024            # headroom under 48 MiB limit
    if block_rows is None:
        rows_cap = max(align, vmem_budget // per_row)
    else:
        rows_cap = max(1, int(block_rows))

    if n <= rows_cap:
        tn = n                                # single full-extent block
    else:
        tn = max(align, (rows_cap // align) * align)
    grid_n = pl.cdiv(n, tn)

    targets_2d = targets.astype(jnp.int32).reshape(n, 1)

    kernel = functools.partial(
        _nmae_kernel, n_total=n, block_rows=tn, inv_scale=1.0 / scale)

    partials = pl.pallas_call(
        kernel,
        out_shape=jax.ShapeDtypeStruct((grid_n, 8, 128), jnp.float32),
        grid=(grid_n,),
        in_specs=[
            pl.BlockSpec((tn, c), lambda i: (i, 0)),
            pl.BlockSpec((tn, 1), lambda i: (i, 0)),
        ],
        out_specs=pl.BlockSpec((1, 8, 128), lambda i: (i, 0, 0)),
        compiler_params=pltpu.CompilerParams(
            dimension_semantics=("parallel",),
            vmem_limit_bytes=48 * 1024 * 1024),
        cost_estimate=pl.CostEstimate(
            flops=8 * n * c,
            transcendentals=n * c,
            bytes_accessed=n * c * itemsize + n * 4 + grid_n * 8 * 128 * 4),
    )(logits, targets_2d)

    total = jnp.sum(partials[:, 0, 0])
    if reduction == 'mean':
        return total / jnp.float32(n)
    return total


def _nmae_loss_ref(logits, targets, num_classes=None, reduction='mean'):
    """Pure-JAX reference matching the PyTorch NMAELoss forward."""
    n, c = logits.shape
    if num_classes is None:
        num_classes = c
    scale = 2.0 * (float(num_classes) - 1.0)
    if abs(scale) < 1e-9:
        scale = 1.0
    probs = jax.nn.softmax(logits.astype(jnp.float32), axis=1)
    onehot = jax.nn.one_hot(targets, c, dtype=jnp.float32)
    mae = jnp.sum(jnp.abs(probs - onehot), axis=1)
    nmae = mae / scale
    if reduction == 'mean':
        return jnp.mean(nmae)
    if reduction == 'sum':
        return jnp.sum(nmae)
    return nmae


if __name__ == "__main__":
    key = jax.random.PRNGKey(0)
    k1, k2 = jax.random.split(key)

    # Small shapes consistent with the module: batch=16, num_classes=10.
    N, C = 16, 10
    logits = jax.random.normal(k1, (N, C), dtype=jnp.float32)
    targets = jax.random.randint(k2, (N,), 0, C, dtype=jnp.int32)

    loss = nmae_loss(logits, targets)
    jax.block_until_ready(loss)
    ref = _nmae_loss_ref(logits, targets)
    assert jnp.allclose(loss, ref, atol=1e-6, rtol=1e-5), (loss, ref)

    # Tiled + masked-partial-tile path (grid > 1, N % TN != 0), parallel axis.
    N2, C2 = 20, 10
    logits2 = jax.random.normal(k1, (N2, C2), dtype=jnp.float32)
    targets2 = jax.random.randint(k2, (N2,), 0, C2, dtype=jnp.int32)
    loss2 = nmae_loss(logits2, targets2, block_rows=8)
    jax.block_until_ready(loss2)
    ref2 = _nmae_loss_ref(logits2, targets2)
    assert jnp.allclose(loss2, ref2, atol=1e-6, rtol=1e-5), (loss2, ref2)

    # bf16 logits: in-kernel upcast, dtype-aware (16-row) alignment, 'sum'.
    N3, C3 = 40, 10
    logits3 = jax.random.normal(k1, (N3, C3), dtype=jnp.bfloat16)
    targets3 = jax.random.randint(k2, (N3,), 0, C3, dtype=jnp.int32)
    loss3 = nmae_loss(logits3, targets3, reduction='sum', block_rows=16)
    jax.block_until_ready(loss3)
    ref3 = _nmae_loss_ref(logits3, targets3, reduction='sum')
    assert jnp.allclose(loss3, ref3, atol=1e-5, rtol=1e-4), (loss3, ref3)

    print("KERNEL_OK")
</pallas_src>

<mosaic_0001>
module attributes {stable_mosaic.version = 11 : i64} {
  func.func @_nmae_kernel(%arg0: i32, %arg1: memref<16x10xf32, #tpu.memory_space<vmem>>, %arg2: memref<16x1xi32, #tpu.memory_space<vmem>>, %arg3: memref<1x8x128xf32, #tpu.memory_space<vmem>>) attributes {dimension_semantics = [#tpu.dimension_semantics<parallel>], iteration_bounds = array<i64: 1>, scalar_prefetch = 0 : i64, scratch_operands = 0 : i64, tpu.core_type = #tpu.core_type<tc>, window_params = [{transform_indices = @transform_0, window_bounds = array<i64: 16, 10>}, {transform_indices = @transform_1, window_bounds = array<i64: 16, 1>}, {transform_indices = @transform_2, window_bounds = array<i64: 1, 8, 128>}]} {
    %c0 = arith.constant 0 : index
    %c0_0 = arith.constant 0 : index
    %0 = vector.load %arg1[%c0, %c0_0] : memref<16x10xf32, #tpu.memory_space<vmem>>, vector<16x10xf32>
    %cst = arith.constant dense<0xFF800000> : vector<16xf32>
    %1 = vector.multi_reduction <maximumf>, %0, %cst [1] : vector<16x10xf32> to vector<16xf32>
    %2 = vector.shape_cast %1 : vector<16xf32> to vector<16x1xf32>
    %3 = vector.broadcast %2 : vector<16x1xf32> to vector<16x10xf32>
    %4 = arith.subf %0, %3 : vector<16x10xf32>
    %5 = math.exp %4 : vector<16x10xf32>
    %cst_1 = arith.constant dense<0.000000e+00> : vector<16xf32>
    %6 = vector.multi_reduction <add>, %5, %cst_1 [1] : vector<16x10xf32> to vector<16xf32>
    %7 = vector.shape_cast %6 : vector<16xf32> to vector<16x1xf32>
    %c0_2 = arith.constant 0 : index
    %c0_3 = arith.constant 0 : index
    %8 = vector.load %arg2[%c0_2, %c0_3] : memref<16x1xi32, #tpu.memory_space<vmem>>, vector<16x1xi32>
    %9 = tpu.iota {dimensions = array<i32: 1>} : vector<16x10xi32>
    %10 = vector.broadcast %8 : vector<16x1xi32> to vector<16x10xi32>
    %11 = arith.cmpi eq, %9, %10 : vector<16x10xi32>
    %cst_4 = arith.constant 0.000000e+00 : f32
    %12 = vector.broadcast %cst_4 : f32 to vector<16x10xf32>
    %13 = arith.select %11, %5, %12 : vector<16x10xi1>, vector<16x10xf32>
    %cst_5 = arith.constant dense<0.000000e+00> : vector<16xf32>
    %14 = vector.multi_reduction <add>, %13, %cst_5 [1] : vector<16x10xf32> to vector<16xf32>
    %15 = vector.shape_cast %14 : vector<16xf32> to vector<16x1xf32>
    %16 = arith.divf %15, %7 : vector<16x1xf32>
    %cst_6 = arith.constant 1.000000e+00 : f32
    %17 = vector.broadcast %cst_6 : f32 to vector<16x1xf32>
    %18 = arith.subf %17, %16 : vector<16x1xf32>
    %cst_7 = arith.constant 2.000000e+00 : f32
    %19 = vector.broadcast %cst_7 : f32 to vector<16x1xf32>
    %20 = arith.mulf %19, %18 : vector<16x1xf32>
    %cst_8 = arith.constant 0.055555556 : f32
    %21 = vector.broadcast %cst_8 : f32 to vector<16x1xf32>
    %22 = arith.mulf %20, %21 : vector<16x1xf32>
    %c16_i32 = arith.constant 16 : i32
    %23 = arith.muli %arg0, %c16_i32 : i32
    %24 = tpu.iota {dimensions = array<i32: 0>} : vector<16x1xi32>
    %25 = vector.broadcast %23 : i32 to vector<16x1xi32>
    %26 = arith.addi %25, %24 : vector<16x1xi32>
    %c16_i32_9 = arith.constant 16 : i32
    %27 = vector.broadcast %c16_i32_9 : i32 to vector<16x1xi32>
    %28 = arith.cmpi slt, %26, %27 : vector<16x1xi32>
    %cst_10 = arith.constant 0.000000e+00 : f32
    %29 = vector.broadcast %cst_10 : f32 to vector<16x1xf32>
    %30 = arith.select %28, %22, %29 : vector<16x1xi1>, vector<16x1xf32>
    %31 = vector.shape_cast %30 : vector<16x1xf32> to vector<1x16x1xf32>
    %cst_11 = arith.constant dense<0.000000e+00> : vector<1xf32>
    %32 = vector.multi_reduction <add>, %31, %cst_11 [1, 2] : vector<1x16x1xf32> to vector<1xf32>
    %33 = vector.shape_cast %32 : vector<1xf32> to vector<1x1x1xf32>
    %34 = vector.extract %33[0, 0, 0] : f32 from vector<1x1x1xf32>
    %35 = vector.broadcast %34 : f32 to vector<1x8x128xf32>
    %c0_12 = arith.constant 0 : index
    %c0_13 = arith.constant 0 : index
    %c0_14 = arith.constant 0 : index
    %36 = vector.load %arg3[%c0_12, %c0_13, %c0_14] : memref<1x8x128xf32, #tpu.memory_space<vmem>>, vector<1x8x128xf32>
    tpu.vector_store %arg3[%c0_12, %c0_13, %c0_14], %35 {strides = array<i32>} : memref<1x8x128xf32, #tpu.memory_space<vmem>>, vector<1x8x128xf32>,
    return
  }
  func.func @transform_0(%arg0: i32) -> (i32, i32) {
    %c0_i32 = arith.constant 0 : i32
    %c0_i32_0 = arith.constant 0 : i32
    return %arg0, %c0_i32 : i32, i32
  }
  func.func @transform_1(%arg0: i32) -> (i32, i32) {
    %c0_i32 = arith.constant 0 : i32
    %c0_i32_0 = arith.constant 0 : i32
    return %arg0, %c0_i32 : i32, i32
  }
  func.func @transform_2(%arg0: i32) -> (i32, i32, i32) {
    %c0_i32 = arith.constant 0 : i32
    %c0_i32_0 = arith.constant 0 : i32
    %c0_i32_1 = arith.constant 0 : i32
    return %arg0, %c0_i32, %c0_i32_0 : i32, i32, i32
  }
}

</mosaic_0001>

<llo_original>
// kernel: tpu_custom_call.1
$region0: #{tpu_custom_call.1}
  #allocation0 [shape = 'u32[]', space=smem, size = 0x4, offset = 0x4, fixed_abs, tag = 'smem constant byte address 0x4 - core index']
  #allocation1 [shape = 'u32[72,128]{1,0:T(1,128)}', space=vmem, size = 0x9000, scoped, tag = 'internal scratch']
  %s0 = inlined_call_operand.vmem [shape: f32[16,10], index: 0, kind: input, shape index: {}]
  %s1 = inlined_call_operand.vmem [shape: s32[16,1], index: 1, kind: input, shape index: {}]
  %s2 = inlined_call_operand.hbm [shape: f32[1,8,128], index: 2, kind: output, shape index: {}]
  %s3 = sld [smem:[#allocation0]]
  $region18: #{tpu_custom_call.1} parent=0
    _
  %s5 = ssub.s32 1, %s3
  %s6 = scalar_select 0, %s5, %s3
  $region1: #{tpu_custom_call.1} parent=0
    #allocation2 [shape = 'u8[4096]{0}', space=vmem, size = 0x1000, scoped, tag = 'output window, operand 0, single buffered']
    #allocation3 [shape = 's32[1]{0}', space=sflag, size = 0x4, scoped, tag = 'scoped memory for tpu_custom_call.1']
    %7 = vsyncpa [#allocation3], 0
    // Predicated region
    $region2: #{tpu_custom_call.1} parent=1 // pred_check
      _
    $region3: #{tpu_custom_call.1} parent=1 // pred_check_branch
      %9 = sbr.rel (0) target = $region5
    $region4: #{tpu_custom_call.1} parent=1 // pred_region
      _
    $region5: #{tpu_custom_call.1} parent=1 // pred_fallthru
      _
    // Predicated region
    $region6: #{tpu_custom_call.1} parent=1 // pred_check
      _
    $region7: #{tpu_custom_call.1} parent=1 // pred_check_branch
      %11 = sbr.rel (0) target = $region9
    $region8: #{tpu_custom_call.1} parent=1 // pred_region
      _
    $region9: #{tpu_custom_call.1} parent=1 // pred_fallthru
      _
    %v12 = vld [vmem:[%s0] sm:$0xff]
    %v13 = vld [vmem:[%s0 + $0x8] sm:$0xff]
    %vm14 = vcmask 80896
    %v15 = vsel %vm14, %v12, -inf
    %16 = vmax.xlane.f32.xlu0 %v15
    %v17 = vpop.xlane.xlu0 %16
    %v18 = vsel %vm14, %v13, -inf
    %19 = vmax.xlane.f32.xlu0 %v18
    %v20 = vpop.xlane.xlu0 %19
    %v21 = vsub.f32 %v12, %v17
    %v22 = vsub.f32 %v13, %v20
    %v23 = vmul.f32 %v21, 1.442695
    %v24 = vpow.pop %v23
    %v25 = vmul.f32 %v22, 1.442695
    %v26 = vpow.pop %v25
    %v27 = vsel %vm14, %v24, 0.0
    %28 = vadd.xlane.f32.xlu0 %v27
    %v29 = vpop.xlane.xlu0 %28
    %v30 = vsel %vm14, %v26, 0.0
    %31 = vadd.xlane.f32.xlu0 %v30
    %v32 = vpop.xlane.xlu0 %31
    %v33 = vld [vmem:[%s1] sm:$0xff]
    %v34 = vld [vmem:[%s1 + $0x8] sm:$0xff]
    %v35 = vlaneseq
    %v36 = vand.u32 %v35, 127
    %37 = vset.pattern.permute.xlu0 0
    %38 = vperm.xlu0 %37, %v33
    %v39 = vpop.permute.xlu0 %38
    %40 = vset.pattern.permute.xlu0 0
    %41 = vperm.xlu0 %40, %v34
    %v42 = vpop.permute.xlu0 %41
    %vm43 = vcmp.eq.s32.totalorder %v36, %v39
    %vm44 = vcmp.eq.s32.totalorder %v36, %v42
    %v45 = vsel %vm43, %v24, 0.0
    %v46 = vsel %vm44, %v26, 0.0
    %v47 = vsel %vm14, %v45, 0.0
    %48 = vadd.xlane.f32.xlu0 %v47
    %v49 = vpop.xlane.xlu0 %48
    %v50 = vsel %vm14, %v46, 0.0
    %51 = vadd.xlane.f32.xlu0 %v50
    %v52 = vpop.xlane.xlu0 %51
    %v53 = vrcp.pop %v29
    %v54 = vmul.f32 %v29, %v53
    %v55 = vsub.f32 1.0, %v54
    %v56 = vmul.f32 %v53, %v55
    %v57 = vadd.f32 %v53, %v56
    %vm58 = vweird.f32 %v29
    %vm59 = vweird.f32 %v53
    %vm60 = vmor %vm58, %vm59
    %v61 = vsel %vm60, %v53, %v57
    %v62 = vand.u32 2147483647, %v29
    %vm63 = vcmp.eq.f32.partialorder %v62, 8.507059e+37
    %v64 = vand.u32 %v29, 2147483648
    %v65 = vor.u32 1.1754944e-38, %v64
    %v66 = vsel %vm63, %v65, %v61
    %v67 = vmul.f32 %v49, %v66
    %v68 = vrcp.pop %v32
    %v69 = vmul.f32 %v32, %v68
    %v70 = vsub.f32 1.0, %v69
    %v71 = vmul.f32 %v68, %v70
    %v72 = vadd.f32 %v68, %v71
    %vm73 = vweird.f32 %v32
    %vm74 = vweird.f32 %v68
    %vm75 = vmor %vm73, %vm74
    %v76 = vsel %vm75, %v68, %v72
    %v77 = vand.u32 2147483647, %v32
    %vm78 = vcmp.eq.f32.partialorder %v77, 8.507059e+37
    %v79 = vand.u32 %v32, 2147483648
    %v80 = vor.u32 1.1754944e-38, %v79
    %v81 = vsel %vm78, %v80, %v76
    %v82 = vmul.f32 %v52, %v81
    %v83 = vsub.f32 1.0, %v67
    %v84 = vsub.f32 1.0, %v82
    %v85 = vmul.f32 %v83, 2.0
    %v86 = vmul.f32 %v84, 2.0
    %v87 = vmul.f32 %v85, 0.055555556
    %v88 = vmul.f32 %v86, 0.055555556
    %s89 = smul.u32 0, 16
    %v90 = vlaneseq
    %v91 = vshrl.u32 %v90, 7
    %v92 = vadd.s32 %v91, 8
    %v93 = vstv %s89
    %v94 = vadd.s32 %v93, %v91
    %v95 = vadd.s32 %v93, %v92
    %vm96 = vcmp.lt.s32.totalorder %v94, 16
    %vm97 = vcmp.lt.s32.totalorder %v95, 16
    %v98 = vsel %vm96, %v87, 0.0
    %v99 = vsel %vm97, %v88, 0.0
    %vm100 = vcmask 7168
    %v101 = vsel %vm100, %v98, 0.0
    %v102 = vsel %vm100, %v99, 0.0
    %v103 = vadd.f32 %v101, %v102
    %104 = vadd.xlane.f32.xlu0 %v103
    %v105 = vpop.xlane.xlu0 %104
    %v106 = vrot.slane %v105, 4
    %v107 = vadd.f32 %v105, %v106
    %v108 = vrot.slane %v107, 2
    %v109 = vadd.f32 %v107, %v108
    %v110 = vrot.slane %v109, 1
    %v111 = vadd.f32 %v109, %v110
    %s112 = vtos %v111
    %v113 = vstv %s112
    %114 = vst [vmem:[#allocation2] sm:$0xff] %v113
    // Predicated region
    $region10: #{tpu_custom_call.1} parent=1 // pred_check
      _
    $region11: #{tpu_custom_call.1} parent=1 // pred_check_branch
      %116 = sbr.rel (0) target = $region13
    $region12: #{tpu_custom_call.1} parent=1 // pred_region
      %118 = vsyncadd [#allocation3], 0
      %s120 = sshll.u32 [#allocation2], 4
      %s121 = int_to_ptr.vmem [resolvable:$true] %s120
      %s122 = sshll.u32 %s2, 4
      %s123 = int_to_ptr.hbm [resolvable:$true] %s122
      %125 = dma.vmem_to_hbm [thread:$0]  %s121, 128, %s123, [#allocation3]
    $region13: #{tpu_custom_call.1} parent=1 // pred_fallthru
      _
    // Predicated region
    $region14: #{tpu_custom_call.1} parent=1 // pred_check
      _
    $region15: #{tpu_custom_call.1} parent=1 // pred_check_branch
      %127 = sbr.rel (0) target = $region17
    $region16: #{tpu_custom_call.1} parent=1 // pred_region
      %129 = dma.done [#allocation3], 128
    $region17: #{tpu_custom_call.1} parent=1 // pred_fallthru
      _
    %130 = vsyncpa [#allocation3], 1

</llo_original>
